<compile_context>
chip_gen: v6e
topology: v6e:2x2x1
jax: 0.10.0
libtpu: 0.0.40
codegen_flags: <defaults>
</compile_context>

<pallas_src>
import functools

import jax
import jax.numpy as jnp
from jax.experimental import pallas as pl
from jax.experimental.pallas import tpu as pltpu

_LANE = 128
_SUBLANE = 8


def _round_up(x, m):
    return ((x + m - 1) // m) * m


def _cdiv(a, b):
    return -(-a // b)


def _vmem_capacity_bytes():
    try:
        return int(pltpu.get_tpu_info().vmem_capacity_bytes)
    except Exception:  # interpret mode / older runtimes
        return 64 * 1024 * 1024  # conservative: v7x per-TC VMEM


def _vmem_budget():
    # ~45 MiB on v7x (64 MiB/TC), ~90 MiB on v5e/v6e (128 MiB).
    return int(_vmem_capacity_bytes() * 0.70)


def _vmem_limit(need_bytes):
    cap = _vmem_capacity_bytes()
    return int(min(max(2 * need_bytes, 32 * 1024 * 1024), int(cap * 0.85)))


def _pick_row_tile(n_rows, per_row_bytes, resident_bytes, tm_req=512):
    """Row tile: large, multiple of 8, fits the generation-aware VMEM budget."""
    budget = _vmem_budget()
    tm = min(_round_up(tm_req, _SUBLANE), _round_up(n_rows, _SUBLANE))
    # Guarantee >= 2 grid steps when possible so the 'parallel' row axis can be
    # split across both TensorCores on v7x; costs one extra ~0.35us step on
    # single-TC chips, which is negligible.
    if n_rows > 2 * _SUBLANE:
        tm = min(tm, _round_up(_cdiv(n_rows, 2), _SUBLANE))
    while tm > _SUBLANE and resident_bytes + tm * per_row_bytes > budget:
        tm = max(_SUBLANE, _round_up(tm // 2, _SUBLANE))
    return tm


# ----------------------------- Pallas kernels ------------------------------

def _mlp3_kernel(x_ref, w1_ref, b1_ref, w2_ref, b2_ref, w3_ref, b3_ref, o_ref,
                 *, final_relu):
    """Fused 3-layer MLP on one row tile; intermediates never leave VMEM."""
    h = jnp.dot(x_ref[...], w1_ref[...], preferred_element_type=jnp.float32)
    h = jnp.maximum(h + b1_ref[...], 0.0)
    h = jnp.dot(h.astype(w2_ref.dtype), w2_ref[...],
                preferred_element_type=jnp.float32)
    h = jnp.maximum(h + b2_ref[...], 0.0)
    y = jnp.dot(h.astype(w3_ref.dtype), w3_ref[...],
                preferred_element_type=jnp.float32) + b3_ref[...]
    if final_relu:
        y = jnp.maximum(y, 0.0)
    o_ref[...] = y.astype(o_ref.dtype)


def _propagator_kernel(*refs, n_parts, has_res):
    """relu(sum_i x_i @ W_i + b [+ res]) -- K-split dots, no concat in HBM."""
    xs = refs[:n_parts]
    ws = refs[n_parts:2 * n_parts]
    b_ref = refs[2 * n_parts]
    idx = 2 * n_parts + 1
    acc = jnp.dot(xs[0][...], ws[0][...], preferred_element_type=jnp.float32)
    for i in range(1, n_parts):
        acc = acc + jnp.dot(xs[i][...], ws[i][...],
                            preferred_element_type=jnp.float32)
    acc = acc + b_ref[...]
    if has_res:
        acc = acc + refs[idx][...].astype(jnp.float32)
        idx += 1
    o_ref = refs[idx]
    o_ref[...] = jnp.maximum(acc, 0.0).astype(o_ref.dtype)


# ------------------------------ Pallas wrappers -----------------------------

def mlp3_pallas(layers, x, *, final_relu=True, tm_req=512):
    """Fused Encoder / ParticlePredictor: 3 Linear layers in one pallas_call."""
    s_x = x.shape
    d_in = s_x[-1]
    dims = [(l['w_t'].shape[0], l['w_t'].shape[1]) for l in layers]
    d_out = dims[-1][1]
    dtype = x.dtype
    isz = dtype.itemsize

    x_flat = x.reshape(-1, d_in)
    n_rows = x_flat.shape[0]

    lane = lambda n: _round_up(n, _LANE)
    # VMEM accounting with physical (8,128) tile padding; weights/biases are
    # resident (constant index_map) but counted double-buffered to be safe.
    resident = 0
    for (k, n) in dims:
        resident += 2 * isz * _round_up(k, _SUBLANE) * lane(n)   # weight
        resident += 2 * isz * _SUBLANE * lane(n)                 # bias
    per_row = 2 * isz * lane(d_in)                               # x stream
    per_row += 2 * isz * lane(d_out)                             # out stream
    per_row += isz * (lane(dims[0][1]) + lane(dims[1][1]))       # h1, h2

    tm = _pick_row_tile(n_rows, per_row, resident, tm_req)
    grid = (_cdiv(n_rows, tm),)   # partial last block: stores are masked

    operands = [x_flat]
    in_specs = [pl.BlockSpec((tm, d_in), lambda i: (i, 0))]
    for layer, (k, n) in zip(layers, dims):
        operands += [layer['w_t'], layer['b'].reshape(1, -1)]
        in_specs += [pl.BlockSpec((k, n), lambda i: (0, 0)),
                     pl.BlockSpec((1, n), lambda i: (0, 0))]

    flops = 2 * n_rows * sum(k * n for k, n in dims)
    bytes_accessed = isz * (n_rows * (d_in + d_out)
                            + sum(k * n + n for k, n in dims))
    need = resident + tm * per_row

    out = pl.pallas_call(
        functools.partial(_mlp3_kernel, final_relu=final_relu),
        out_shape=jax.ShapeDtypeStruct((n_rows, d_out), dtype),
        grid_spec=pltpu.PrefetchScalarGridSpec(
            num_scalar_prefetch=0,
            grid=grid,
            in_specs=in_specs,
            out_specs=pl.BlockSpec((tm, d_out), lambda i: (i, 0)),
        ),
        compiler_params=pltpu.CompilerParams(
            dimension_semantics=("parallel",),
            vmem_limit_bytes=_vmem_limit(need),
        ),
        cost_estimate=pl.CostEstimate(flops=int(flops), transcendentals=0,
                                      bytes_accessed=int(bytes_accessed)),
    )(*operands)
    return out.reshape(tuple(s_x[:-1]) + (d_out,))


def propagator_pallas(layer, xs, *, res=None, tm_req=512):
    """Fused Propagator: relu(sum_i x_i @ W_i + b [+ res]) without XLA concat.

    layer['w_t'] is the full (sum K_i, d_out) weight; it is split along K at
    trace time so the concatenated input is never materialised in HBM.
    """
    lead = xs[0].shape[:-1]
    k_dims = [int(x.shape[-1]) for x in xs]
    w_t, b = layer['w_t'], layer['b']
    d_out = w_t.shape[1]
    dtype = xs[0].dtype
    isz = dtype.itemsize
    assert sum(k_dims) == w_t.shape[0]

    ws, off = [], 0
    for k in k_dims:
        ws.append(w_t[off:off + k, :])
        off += k

    x_flats = [x.reshape(-1, k) for x, k in zip(xs, k_dims)]
    n_rows = x_flats[0].shape[0]

    lane = lambda n: _round_up(n, _LANE)
    resident = 2 * isz * sum(_round_up(k, _SUBLANE) * lane(d_out) for k in k_dims)
    resident += 2 * isz * _SUBLANE * lane(d_out)                 # bias
    per_row = 2 * isz * (sum(lane(k) for k in k_dims) + lane(d_out))
    if res is not None:
        per_row += 2 * isz * lane(d_out)

    tm = _pick_row_tile(n_rows, per_row, resident, tm_req)
    grid = (_cdiv(n_rows, tm),)

    operands = list(x_flats) + ws + [b.reshape(1, -1)]
    in_specs = [pl.BlockSpec((tm, k), lambda i: (i, 0)) for k in k_dims]
    in_specs += [pl.BlockSpec((k, d_out), lambda i: (0, 0)) for k in k_dims]
    in_specs += [pl.BlockSpec((1, d_out), lambda i: (0, 0))]
    if res is not None:
        operands.append(res.reshape(-1, d_out))
        in_specs.append(pl.BlockSpec((tm, d_out), lambda i: (i, 0)))

    flops = 2 * n_rows * sum(k_dims) * d_out
    bytes_accessed = isz * (n_rows * (sum(k_dims)
                                      + d_out * (2 if res is not None else 1))
                            + sum(k_dims) * d_out + d_out)
    need = resident + tm * per_row

    out = pl.pallas_call(
        functools.partial(_propagator_kernel, n_parts=len(xs),
                          has_res=res is not None),
        out_shape=jax.ShapeDtypeStruct((n_rows, d_out), dtype),
        grid_spec=pltpu.PrefetchScalarGridSpec(
            num_scalar_prefetch=0,
            grid=grid,
            in_specs=in_specs,
            out_specs=pl.BlockSpec((tm, d_out), lambda i: (i, 0)),
        ),
        compiler_params=pltpu.CompilerParams(
            dimension_semantics=("parallel",),
            vmem_limit_bytes=_vmem_limit(need),
        ),
        cost_estimate=pl.CostEstimate(flops=int(flops), transcendentals=0,
                                      bytes_accessed=int(bytes_accessed)),
    )(*operands)
    return out.reshape(tuple(lead) + (d_out,))


# ----------------------- pure-JAX reference versions ------------------------

def mlp3_ref(layers, x, *, final_relu=True):
    s = x.shape
    h = x.reshape(-1, s[-1])
    for li, layer in enumerate(layers):
        h = jnp.dot(h, layer['w_t'],
                    precision=jax.lax.Precision.HIGHEST) + layer['b']
        if li < len(layers) - 1 or final_relu:
            h = jnp.maximum(h, 0.0)
    return h.reshape(tuple(s[:-1]) + (layers[-1]['w_t'].shape[1],))


def propagator_ref(layer, xs, *, res=None):
    x = jnp.concatenate(xs, axis=-1)
    s = x.shape
    y = jnp.dot(x.reshape(-1, s[-1]), layer['w_t'],
                precision=jax.lax.Precision.HIGHEST) + layer['b']
    if res is not None:
        y = y + res.reshape(-1, layer['w_t'].shape[1])
    y = jnp.maximum(y, 0.0)
    return y.reshape(tuple(s[:-1]) + (layer['w_t'].shape[1],))


# ------------------------- DynamicsPredictor model --------------------------

def init_linear(key, d_in, d_out):
    kw, kb = jax.random.split(key)
    scale = 1.0 / (d_in ** 0.5)
    return {
        'w_t': jax.random.uniform(kw, (d_in, d_out), jnp.float32, -scale, scale),
        'b': jax.random.uniform(kb, (d_out,), jnp.float32, -scale, scale),
    }


def init_params(key, cfg):
    motion_dim = cfg.get('motion_dim', 0)
    input_dim = (cfg['n_his'] * cfg['state_dim']
                 + (cfg['n_his'] - 1) * motion_dim
                 + cfg['attr_dim'] + cfg['action_dim'])
    rel_input_dim = (cfg['rel_attr_dim'] * 2 + cfg['rel_group_dim']
                     + cfg['rel_distance_dim'] * cfg['n_his'])
    nf_p, nf_r, nf_e = cfg['nf_particle'], cfg['nf_relation'], cfg['nf_effect']
    keys = jax.random.split(key, 11)
    return {
        'particle_encoder': [init_linear(keys[0], input_dim, nf_p),
                             init_linear(keys[1], nf_p, nf_p),
                             init_linear(keys[2], nf_p, nf_e)],
        'relation_encoder': [init_linear(keys[3], rel_input_dim, nf_r),
                             init_linear(keys[4], nf_r, nf_r),
                             init_linear(keys[5], nf_r, nf_e)],
        'particle_propagator': init_linear(keys[6], nf_e * 2, nf_e),
        'relation_propagator': init_linear(keys[7], nf_e * 3, nf_e),
        'non_rigid_predictor': [init_linear(keys[8], nf_e, nf_e),
                                init_linear(keys[9], nf_e, nf_e),
                                init_linear(keys[10], nf_e, 3)],
    }


def dynamics_forward(params, cfg, state, attrs, Rr, Rs, p_instance, action=None,
                     *, mlp3_fn, prop_fn):
    n_his = cfg['n_his']
    B, N = attrs.shape[0], attrs.shape[1]
    n_instance = p_instance.shape[2]
    n_p = p_instance.shape[1]
    n_s = N - n_p
    state_dim = state.shape[3]
    motion_dim = cfg.get('motion_dim', 0)
    motion_clamp = 100.0

    Rr_t = jnp.swapaxes(Rr, 1, 2)
    state_t = jnp.swapaxes(state, 1, 2).reshape(B, N, n_his * state_dim)

    p_inputs = attrs
    if cfg['state_dim'] > 0:
        if cfg['state_dim'] == 3:
            p_inputs = jnp.concatenate([p_inputs, state_t], axis=2)
        elif cfg['state_dim'] == 1:
            state_t_xyz = state_t.reshape(B, N, n_his, state_dim)
            p_inputs = jnp.concatenate([attrs, state_t_xyz[:, :, :, 2]], axis=2)
    if motion_dim > 0:
        state_t_xyz = state_t.reshape(B, N, n_his, state_dim)
        motion = (state_t_xyz[:, :, 1:] - state_t_xyz[:, :, :-1]).reshape(
            B, N, (n_his - 1) * 3)
        p_inputs = jnp.concatenate([p_inputs, motion], axis=2)
    if cfg['action_dim'] > 0:
        p_inputs = jnp.concatenate([p_inputs, action], axis=2)

    rel_feats = []
    if cfg['rel_attr_dim'] > 0:
        rel_feats += [jnp.matmul(Rr, attrs), jnp.matmul(Rs, attrs)]
    if cfg['rel_group_dim'] > 0:
        g = jnp.concatenate(
            [p_instance, jnp.zeros((B, n_s, n_instance), p_instance.dtype)], axis=1)
        group_diff = jnp.sum(jnp.abs(jnp.matmul(Rr, g) - jnp.matmul(Rs, g)),
                             axis=2, keepdims=True)
        rel_feats.append(group_diff)
    if cfg['rel_distance_dim'] > 0:
        rel_feats.append(jnp.matmul(Rr, state_t) - jnp.matmul(Rs, state_t))
    rel_inputs = jnp.concatenate(rel_feats, axis=2)

    # Fused 3-layer encoders (one pallas_call each).
    particle_encode = mlp3_fn(params['particle_encoder'], p_inputs, final_relu=True)
    relation_encode = mlp3_fn(params['relation_encoder'], rel_inputs, final_relu=True)
    particle_effect = particle_encode

    for _ in range(cfg['pstep']):
        effect_r = jnp.matmul(Rr, particle_effect)
        effect_s = jnp.matmul(Rs, particle_effect)
        # K-split fused propagator: no (B, n_rel, 384) concat in HBM.
        effect_rel = prop_fn(params['relation_propagator'],
                             [relation_encode, effect_r, effect_s])
        effect_rel_agg = jnp.matmul(Rr_t, effect_rel)
        particle_effect = prop_fn(params['particle_propagator'],
                                  [particle_encode, effect_rel_agg],
                                  res=particle_effect)

    pred_motion = mlp3_fn(params['non_rigid_predictor'],
                          particle_effect[:, :n_p], final_relu=False)
    pred_pos = state[:, -1, :n_p] + jnp.clip(pred_motion, -motion_clamp, motion_clamp)
    return pred_pos, pred_motion


# ----------------------------------- main ------------------------------------

if __name__ == "__main__":
    cfg = {
        'n_his': 2,
        'state_dim': 3,
        'attr_dim': 2,
        'action_dim': 0,
        'rel_attr_dim': 2,
        'rel_group_dim': 1,
        'rel_distance_dim': 3,
        'motion_dim': 3,
        'nf_particle': 128,
        'nf_relation': 128,
        'nf_effect': 128,
        'pstep': 2,
        'verbose': False,
    }

    B, n_p, n_s, n_rel, n_instance = 2, 10, 2, 16, 3
    N = n_p + n_s

    key = jax.random.PRNGKey(0)
    k_params, k_state, k_attrs, k_Rr, k_Rs, k_pi = jax.random.split(key, 6)

    params = init_params(k_params, cfg)

    state = jax.random.normal(k_state, (B, cfg['n_his'], N, 3), jnp.float32)
    attrs = jax.random.normal(k_attrs, (B, N, cfg['attr_dim']), jnp.float32)
    Rr = (jax.random.uniform(k_Rr, (B, n_rel, N)) > 0.8).astype(jnp.float32)
    Rs = (jax.random.uniform(k_Rs, (B, n_rel, N)) > 0.8).astype(jnp.float32)
    p_instance = (jax.random.uniform(k_pi, (B, n_p, n_instance)) > 0.5).astype(
        jnp.float32)

    # Pallas-kernel forward (fused MLP chains + K-split fused propagators).
    pred_pos, pred_motion = dynamics_forward(
        params, cfg, state, attrs, Rr, Rs, p_instance, action=None,
        mlp3_fn=mlp3_pallas, prop_fn=propagator_pallas)
    pred_pos = jax.block_until_ready(pred_pos)
    pred_motion = jax.block_until_ready(pred_motion)

    # Pure-JAX reference forward.
    ref_pos, ref_motion = dynamics_forward(
        params, cfg, state, attrs, Rr, Rs, p_instance, action=None,
        mlp3_fn=mlp3_ref, prop_fn=propagator_ref)

    assert pred_pos.shape == (B, n_p, 3)
    assert pred_motion.shape == (B, n_p, 3)
    assert jnp.allclose(pred_motion, ref_motion, rtol=1e-3, atol=1e-3)
    assert jnp.allclose(pred_pos, ref_pos, rtol=1e-3, atol=1e-3)

    print("KERNEL_OK")
</pallas_src>

<mosaic_0001>
module attributes {stable_mosaic.version = 11 : i64} {
  func.func @_mlp3_kernel(%arg0: i32, %arg1: memref<16x11xf32, #tpu.memory_space<vmem>>, %arg2: memref<11x128xf32, #tpu.memory_space<vmem>>, %arg3: memref<1x128xf32, #tpu.memory_space<vmem>>, %arg4: memref<128x128xf32, #tpu.memory_space<vmem>>, %arg5: memref<1x128xf32, #tpu.memory_space<vmem>>, %arg6: memref<128x128xf32, #tpu.memory_space<vmem>>, %arg7: memref<1x128xf32, #tpu.memory_space<vmem>>, %arg8: memref<16x128xf32, #tpu.memory_space<vmem>>) attributes {dimension_semantics = [#tpu.dimension_semantics<parallel>], iteration_bounds = array<i64: 2>, scalar_prefetch = 0 : i64, scratch_operands = 0 : i64, tpu.core_type = #tpu.core_type<tc>, window_params = [{transform_indices = @transform_0, window_bounds = array<i64: 16, 11>}, {pipeline_mode = #tpu.pipeline_mode<synchronous>, transform_indices = @transform_1, window_bounds = array<i64: 11, 128>}, {pipeline_mode = #tpu.pipeline_mode<synchronous>, transform_indices = @transform_2, window_bounds = array<i64: 1, 128>}, {pipeline_mode = #tpu.pipeline_mode<synchronous>, transform_indices = @transform_3, window_bounds = array<i64: 128, 128>}, {pipeline_mode = #tpu.pipeline_mode<synchronous>, transform_indices = @transform_4, window_bounds = array<i64: 1, 128>}, {pipeline_mode = #tpu.pipeline_mode<synchronous>, transform_indices = @transform_5, window_bounds = array<i64: 128, 128>}, {pipeline_mode = #tpu.pipeline_mode<synchronous>, transform_indices = @transform_6, window_bounds = array<i64: 1, 128>}, {transform_indices = @transform_7, window_bounds = array<i64: 16, 128>}]} {
    %c0 = arith.constant 0 : index
    %c0_0 = arith.constant 0 : index
    %0 = vector.load %arg1[%c0, %c0_0] : memref<16x11xf32, #tpu.memory_space<vmem>>, vector<16x11xf32>
    %c0_1 = arith.constant 0 : index
    %c0_2 = arith.constant 0 : index
    %1 = vector.load %arg2[%c0_1, %c0_2] : memref<11x128xf32, #tpu.memory_space<vmem>>, vector<11x128xf32>
    %cst = arith.constant dense<0.000000e+00> : vector<16x128xf32>
    %2 = tpu.matmul %0, %1, %cst {dimension_numbers = #tpu.dot_dimension_numbers<[1], [0], [0], [1], [0, 0, 1, 1], [], []>} : vector<16x11xf32>, vector<11x128xf32>, vector<16x128xf32> -> vector<16x128xf32>
    %c0_3 = arith.constant 0 : index
    %c0_4 = arith.constant 0 : index
    %3 = vector.load %arg3[%c0_3, %c0_4] : memref<1x128xf32, #tpu.memory_space<vmem>>, vector<1x128xf32>
    %4 = vector.broadcast %3 : vector<1x128xf32> to vector<16x128xf32>
    %5 = arith.addf %2, %4 : vector<16x128xf32>
    %cst_5 = arith.constant 0.000000e+00 : f32
    %6 = vector.broadcast %cst_5 : f32 to vector<16x128xf32>
    %7 = arith.maximumf %5, %6 : vector<16x128xf32>
    %c0_6 = arith.constant 0 : index
    %c0_7 = arith.constant 0 : index
    %8 = vector.load %arg4[%c0_6, %c0_7] : memref<128x128xf32, #tpu.memory_space<vmem>>, vector<128x128xf32>
    %cst_8 = arith.constant dense<0.000000e+00> : vector<16x128xf32>
    %9 = tpu.matmul %7, %8, %cst_8 {dimension_numbers = #tpu.dot_dimension_numbers<[1], [0], [0], [1], [0, 0, 1, 1], [], []>} : vector<16x128xf32>, vector<128x128xf32>, vector<16x128xf32> -> vector<16x128xf32>
    %c0_9 = arith.constant 0 : index
    %c0_10 = arith.constant 0 : index
    %10 = vector.load %arg5[%c0_9, %c0_10] : memref<1x128xf32, #tpu.memory_space<vmem>>, vector<1x128xf32>
    %11 = vector.broadcast %10 : vector<1x128xf32> to vector<16x128xf32>
    %12 = arith.addf %9, %11 : vector<16x128xf32>
    %cst_11 = arith.constant 0.000000e+00 : f32
    %13 = vector.broadcast %cst_11 : f32 to vector<16x128xf32>
    %14 = arith.maximumf %12, %13 : vector<16x128xf32>
    %c0_12 = arith.constant 0 : index
    %c0_13 = arith.constant 0 : index
    %15 = vector.load %arg6[%c0_12, %c0_13] : memref<128x128xf32, #tpu.memory_space<vmem>>, vector<128x128xf32>
    %cst_14 = arith.constant dense<0.000000e+00> : vector<16x128xf32>
    %16 = tpu.matmul %14, %15, %cst_14 {dimension_numbers = #tpu.dot_dimension_numbers<[1], [0], [0], [1], [0, 0, 1, 1], [], []>} : vector<16x128xf32>, vector<128x128xf32>, vector<16x128xf32> -> vector<16x128xf32>
    %c0_15 = arith.constant 0 : index
    %c0_16 = arith.constant 0 : index
    %17 = vector.load %arg7[%c0_15, %c0_16] : memref<1x128xf32, #tpu.memory_space<vmem>>, vector<1x128xf32>
    %18 = vector.broadcast %17 : vector<1x128xf32> to vector<16x128xf32>
    %19 = arith.addf %16, %18 : vector<16x128xf32>
    %cst_17 = arith.constant 0.000000e+00 : f32
    %20 = vector.broadcast %cst_17 : f32 to vector<16x128xf32>
    %21 = arith.maximumf %19, %20 : vector<16x128xf32>
    %c0_18 = arith.constant 0 : index
    %c0_19 = arith.constant 0 : index
    %22 = vector.load %arg8[%c0_18, %c0_19] : memref<16x128xf32, #tpu.memory_space<vmem>>, vector<16x128xf32>
    tpu.vector_store %arg8[%c0_18, %c0_19], %21 {strides = array<i32>} : memref<16x128xf32, #tpu.memory_space<vmem>>, vector<16x128xf32>,
    return
  }
  func.func @transform_0(%arg0: i32) -> (i32, i32) {
    %c0_i32 = arith.constant 0 : i32
    %c0_i32_0 = arith.constant 0 : i32
    return %arg0, %c0_i32 : i32, i32
  }
  func.func @transform_1(%arg0: i32) -> (i32, i32) {
    %c0_i32 = arith.constant 0 : i32
    %c0_i32_0 = arith.constant 0 : i32
    %c0_i32_1 = arith.constant 0 : i32
    return %c0_i32, %c0_i32_0 : i32, i32
  }
  func.func @transform_2(%arg0: i32) -> (i32, i32) {
    %c0_i32 = arith.constant 0 : i32
    %c0_i32_0 = arith.constant 0 : i32
    %c0_i32_1 = arith.constant 0 : i32
    return %c0_i32, %c0_i32_0 : i32, i32
  }
  func.func @transform_3(%arg0: i32) -> (i32, i32) {
    %c0_i32 = arith.constant 0 : i32
    %c0_i32_0 = arith.constant 0 : i32
    %c0_i32_1 = arith.constant 0 : i32
    return %c0_i32, %c0_i32_0 : i32, i32
  }
  func.func @transform_4(%arg0: i32) -> (i32, i32) {
    %c0_i32 = arith.constant 0 : i32
    %c0_i32_0 = arith.constant 0 : i32
    %c0_i32_1 = arith.constant 0 : i32
    return %c0_i32, %c0_i32_0 : i32, i32
  }
  func.func @transform_5(%arg0: i32) -> (i32, i32) {
    %c0_i32 = arith.constant 0 : i32
    %c0_i32_0 = arith.constant 0 : i32
    %c0_i32_1 = arith.constant 0 : i32
    return %c0_i32, %c0_i32_0 : i32, i32
  }
  func.func @transform_6(%arg0: i32) -> (i32, i32) {
    %c0_i32 = arith.constant 0 : i32
    %c0_i32_0 = arith.constant 0 : i32
    %c0_i32_1 = arith.constant 0 : i32
    return %c0_i32, %c0_i32_0 : i32, i32
  }
  func.func @transform_7(%arg0: i32) -> (i32, i32) {
    %c0_i32 = arith.constant 0 : i32
    %c0_i32_0 = arith.constant 0 : i32
    return %arg0, %c0_i32 : i32, i32
  }
}

</mosaic_0001>

<llo_original>
// kernel: tpu_custom_call.1
$region0: #{tpu_custom_call.1}
  #allocation0 [shape = 'u32[]', space=smem, size = 0x4, offset = 0x4, fixed_abs, tag = 'smem constant byte address 0x4 - core index']
  #allocation1 [shape = 'u32[144,128]{1,0:T(1,128)}', space=vmem, size = 0x12000, scoped, tag = 'internal scratch']
  %s0 = inlined_call_operand.vmem [shape: f32[24,11], index: 0, kind: input, shape index: {}]
  %s1 = inlined_call_operand.vmem [shape: f32[11,128], index: 1, kind: input, shape index: {}]
  %s2 = inlined_call_operand.vmem [shape: f32[1,128], index: 2, kind: input, shape index: {}]
  %s3 = inlined_call_operand.hbm [shape: f32[128,128], index: 3, kind: input, shape index: {}]
  %s4 = inlined_call_operand.vmem [shape: f32[1,128], index: 4, kind: input, shape index: {}]
  %s5 = inlined_call_operand.hbm [shape: f32[128,128], index: 5, kind: input, shape index: {}]
  %s6 = inlined_call_operand.vmem [shape: f32[1,128], index: 6, kind: input, shape index: {}]
  %s7 = inlined_call_operand.hbm [shape: f32[24,128], index: 7, kind: output, shape index: {}]
  %s8 = sld [smem:[#allocation0]]
  $region69: #{tpu_custom_call.1} parent=0
    _
  %s10 = ssub.s32 1, %s8
  %s11 = scalar_select 0, %s10, %s8
  $region1: #{tpu_custom_call.1} parent=0
    #allocation2 [shape = 'u8[65536]{0}', space=vmem, size = 0x10000, scoped, tag = 'input window, operand 3, single buffered']
    #allocation3 [shape = 's32[2]{0}', space=sflag, size = 0x8, scoped, tag = 'scoped memory for tpu_custom_call.1']
    #allocation4 [shape = 's32[2]{0}', space=sflag, size = 0x8, scoped, tag = 'scoped memory for tpu_custom_call.1']
    #allocation5 [shape = 'u8[65536]{0}', space=vmem, size = 0x10000, scoped, tag = 'input window, operand 5, single buffered']
    #allocation6 [shape = 's32[1]{0}', space=sflag, size = 0x4, scoped, tag = 'scoped memory for tpu_custom_call.1']
    #allocation7 [shape = 'u8[16384]{0}', space=vmem, size = 0x4000, scoped, tag = 'output window, operand 0']
    %12 = vsyncpa [#allocation3], 0
    %13 = vsyncpa [#allocation6], 0
    %14 = vsyncpa [#allocation4], 0
    %s15 = scalar_lea.sflag [#allocation4], 1
    %16 = vsyncpa %s15, 0
    loop: start=0, step=1, limit=4
    $region2: #{tpu_custom_call.1} parent=1 // loop_pre_header
      _
    $region3: #{tpu_custom_call.1} parent=1 // loop_header
      %s18 = sphi 0, %s22
      %p19 = scmp.ge.s32.totalorder %s18, 4
      %s28 = sphi 0, %s30
      %s31 = sphi 0, %s28
      %s32 = sphi 0, %s31
      %s48 = sphi 0, %s32
      %s52 = sphi 0, %s52
      %s54 = sphi 0, %s52
      %s55 = sphi 0, %s54
      %s69 = sphi 0, %s55
      %s73 = sphi 0, %s73
      %s75 = sphi 0, %s73
      %s76 = sphi 0, %s75
      %s90 = sphi 0, %s76
      %s94 = sphi 0, %s94
      %s96 = sphi 0, %s94
      %s97 = sphi 0, %s96
      %s111 = sphi 0, %s97
      %s115 = sphi 0, %s115
      %s117 = sphi 0, %s115
      %s118 = sphi 0, %s117
      %s132 = sphi 0, %s118
      %s136 = sphi 0, %s136
      %s138 = sphi 0, %s136
      %s139 = sphi 0, %s138
      %s153 = sphi 0, %s139
      %s157 = sphi 0, %s157
      %s159 = sphi 0, %s157
      %s160 = sphi 0, %s159
      %s174 = sphi 0, %s160
      %s180 = sphi 0, %s182
      %s183 = sphi 0, %s180
      %s184 = sphi 0, %s183
      %s200 = sphi 0, %s184
    $region4: #{tpu_custom_call.1} parent=1 // loop_header_branch
      %21 = sbr.rel (%p19) target = $region8
    $region5: #{tpu_custom_call.1} parent=1 // loop_body
      %s23 = ssub.s32 %s18, 1
      %s24 = ssub.s32 %s18, 2
      %s25 = sadd.s32 %s18, 1
      %s26 = ssub.s32 %s18, %s25
      %p27 = scmp.eq.s32.totalorder %s26, 0
      %s29 = sadd.s32 %s28, 1
      %s30 = scalar_select %p27, %s28, %s29
      %p33 = pneg %p27
      %p34 = scmp.eq.s32.totalorder %s18, 1
      %p35 = por %p33, %p34
      %p36 = scmp.ne.s32.totalorder %s28, %s31
      %p37 = scmp.eq.s32.totalorder %s18, 0
      %p38 = por %p36, %p37
      %p39 = scmp.ne.s32.totalorder %s28, %s31
      %p40 = scmp.eq.s32.totalorder %s23, 1
      %p41 = por %p39, %p40
      %p42 = scmp.ne.s32.totalorder %s31, %s32
      %p43 = scmp.eq.s32.totalorder %s23, 0
      %p44 = por %p42, %p43
      %p45 = scmp.ne.s32.totalorder %s31, %s32
      %p46 = scmp.eq.s32.totalorder %s24, 1
      %p47 = por %p45, %p46
      %p49 = scmp.ne.s32.totalorder %s32, %s48
      %p50 = scmp.eq.s32.totalorder %s24, 0
      %p51 = por %p49, %p50
      %s53 = sadd.s32 %s52, 1
      %p56 = scmp.eq.s32.totalorder %s18, 1
      %p57 = scmp.ne.s32.totalorder %s52, %s54
      %p58 = scmp.eq.s32.totalorder %s18, 0
      %p59 = por %p57, %p58
      %p60 = scmp.ne.s32.totalorder %s52, %s54
      %p61 = scmp.eq.s32.totalorder %s23, 1
      %p62 = por %p60, %p61
      %p63 = scmp.ne.s32.totalorder %s54, %s55
      %p64 = scmp.eq.s32.totalorder %s23, 0
      %p65 = por %p63, %p64
      %p66 = scmp.ne.s32.totalorder %s54, %s55
      %p67 = scmp.eq.s32.totalorder %s24, 1
      %p68 = por %p66, %p67
      %p70 = scmp.ne.s32.totalorder %s55, %s69
      %p71 = scmp.eq.s32.totalorder %s24, 0
      %p72 = por %p70, %p71
      %s74 = sadd.s32 %s73, 1
      %p77 = scmp.eq.s32.totalorder %s18, 1
      %p78 = scmp.ne.s32.totalorder %s73, %s75
      %p79 = scmp.eq.s32.totalorder %s18, 0
      %p80 = por %p78, %p79
      %p81 = scmp.ne.s32.totalorder %s73, %s75
      %p82 = scmp.eq.s32.totalorder %s23, 1
      %p83 = por %p81, %p82
      %p84 = scmp.ne.s32.totalorder %s75, %s76
      %p85 = scmp.eq.s32.totalorder %s23, 0
      %p86 = por %p84, %p85
      %p87 = scmp.ne.s32.totalorder %s75, %s76
      %p88 = scmp.eq.s32.totalorder %s24, 1
      %p89 = por %p87, %p88
      %p91 = scmp.ne.s32.totalorder %s76, %s90
      %p92 = scmp.eq.s32.totalorder %s24, 0
      %p93 = por %p91, %p92
      %s95 = sadd.s32 %s94, 1
      %p98 = scmp.eq.s32.totalorder %s18, 1
      %p99 = scmp.ne.s32.totalorder %s94, %s96
      %p100 = scmp.eq.s32.totalorder %s18, 0
      %p101 = por %p99, %p100
      %p102 = scmp.ne.s32.totalorder %s94, %s96
      %p103 = scmp.eq.s32.totalorder %s23, 1
      %p104 = por %p102, %p103
      %p105 = scmp.ne.s32.totalorder %s96, %s97
      %p106 = scmp.eq.s32.totalorder %s23, 0
      %p107 = por %p105, %p106
      %p108 = scmp.ne.s32.totalorder %s96, %s97
      %p109 = scmp.eq.s32.totalorder %s24, 1
      %p110 = por %p108, %p109
      %p112 = scmp.ne.s32.totalorder %s97, %s111
      %p113 = scmp.eq.s32.totalorder %s24, 0
      %p114 = por %p112, %p113
      %s116 = sadd.s32 %s115, 1
      %p119 = scmp.eq.s32.totalorder %s18, 1
      %p120 = scmp.ne.s32.totalorder %s115, %s117
      %p121 = scmp.eq.s32.totalorder %s18, 0
      %p122 = por %p120, %p121
      %p123 = scmp.ne.s32.totalorder %s115, %s117
      %p124 = scmp.eq.s32.totalorder %s23, 1
      %p125 = por %p123, %p124
      %p126 = scmp.ne.s32.totalorder %s117, %s118
      %p127 = scmp.eq.s32.totalorder %s23, 0
      %p128 = por %p126, %p127
      %p129 = scmp.ne.s32.totalorder %s117, %s118
      %p130 = scmp.eq.s32.totalorder %s24, 1
      %p131 = por %p129, %p130
      %p133 = scmp.ne.s32.totalorder %s118, %s132
      %p134 = scmp.eq.s32.totalorder %s24, 0
      %p135 = por %p133, %p134
      %s137 = sadd.s32 %s136, 1
      %p140 = scmp.eq.s32.totalorder %s18, 1
      %p141 = scmp.ne.s32.totalorder %s136, %s138
      %p142 = scmp.eq.s32.totalorder %s18, 0
      %p143 = por %p141, %p142
      %p144 = scmp.ne.s32.totalorder %s136, %s138
      %p145 = scmp.eq.s32.totalorder %s23, 1
      %p146 = por %p144, %p145
      %p147 = scmp.ne.s32.totalorder %s138, %s139
      %p148 = scmp.eq.s32.totalorder %s23, 0
      %p149 = por %p147, %p148
      %p150 = scmp.ne.s32.totalorder %s138, %s139
      %p151 = scmp.eq.s32.totalorder %s24, 1
      %p152 = por %p150, %p151
      %p154 = scmp.ne.s32.totalorder %s139, %s153
      %p155 = scmp.eq.s32.totalorder %s24, 0
      %p156 = por %p154, %p155
      %s158 = sadd.s32 %s157, 1
      %p161 = scmp.eq.s32.totalorder %s18, 1
      %p162 = scmp.ne.s32.totalorder %s157, %s159
      %p163 = scmp.eq.s32.totalorder %s18, 0
      %p164 = por %p162, %p163
      %p165 = scmp.ne.s32.totalorder %s157, %s159
      %p166 = scmp.eq.s32.totalorder %s23, 1
      %p167 = por %p165, %p166
      %p168 = scmp.ne.s32.totalorder %s159, %s160
      %p169 = scmp.eq.s32.totalorder %s23, 0
      %p170 = por %p168, %p169
      %p171 = scmp.ne.s32.totalorder %s159, %s160
      %p172 = scmp.eq.s32.totalorder %s24, 1
      %p173 = por %p171, %p172
      %p175 = scmp.ne.s32.totalorder %s160, %s174
      %p176 = scmp.eq.s32.totalorder %s24, 0
      %p177 = por %p175, %p176
      %s178 = ssub.s32 %s18, %s25
      %p179 = scmp.eq.s32.totalorder %s178, 0
      %s181 = sadd.s32 %s180, 1
      %s182 = scalar_select %p179, %s180, %s181
      %p185 = pneg %p179
      %p186 = scmp.eq.s32.totalorder %s18, 1
      %p187 = por %p185, %p186
      %p188 = scmp.ne.s32.totalorder %s180, %s183
      %p189 = scmp.eq.s32.totalorder %s18, 0
      %p190 = por %p188, %p189
      %p191 = scmp.ne.s32.totalorder %s180, %s183
      %p192 = scmp.eq.s32.totalorder %s23, 1
      %p193 = por %p191, %p192
      %p194 = scmp.ne.s32.totalorder %s183, %s184
      %p195 = scmp.eq.s32.totalorder %s23, 0
      %p196 = por %p194, %p195
      %p197 = scmp.ne.s32.totalorder %s183, %s184
      %p198 = scmp.eq.s32.totalorder %s24, 1
      %p199 = por %p197, %p198
      %p201 = scmp.ne.s32.totalorder %s184, %s200
      %p202 = scmp.eq.s32.totalorder %s24, 0
      %p203 = por %p201, %p202
      %p204 = scmp.le.s32.totalorder 1, %s18
      %p205 = scmp.lt.s32.totalorder %s18, 3
      %p206 = pnand %p204, %p205
      %p207 = pneg %p206
      // Predicated region
      $region9: #{tpu_custom_call.1} parent=5 // pred_check
        _
      $region10: #{tpu_custom_call.1} parent=5 // pred_check_branch
        %209 = sbr.rel (%p206) target = $region12
      $region11: #{tpu_custom_call.1} parent=5 // pred_region
        %s210 = ssub.s32 %s18, 1
        // Predicated region
        $region13: #{tpu_custom_call.1} parent=11 // pred_check
          %p211 = pneg %p65
        $region14: #{tpu_custom_call.1} parent=11 // pred_check_branch
          %213 = sbr.rel (%p211) target = $region16
        $region15: #{tpu_custom_call.1} parent=11 // pred_region
          _
        $region16: #{tpu_custom_call.1} parent=11 // pred_fallthru
          _
        // Predicated region
        $region17: #{tpu_custom_call.1} parent=11 // pred_check
          %p214 = pneg %p86
        $region18: #{tpu_custom_call.1} parent=11 // pred_check_branch
          %216 = sbr.rel (%p214) target = $region20
        $region19: #{tpu_custom_call.1} parent=11 // pred_region
          _
        $region20: #{tpu_custom_call.1} parent=11 // pred_fallthru
          _
        // Predicated region
        $region21: #{tpu_custom_call.1} parent=11 // pred_check
          %p217 = pneg %p107
        $region22: #{tpu_custom_call.1} parent=11 // pred_check_branch
          %219 = sbr.rel (%p217) target = $region24
        $region23: #{tpu_custom_call.1} parent=11 // pred_region
          %s221 = ssub.s32 2048, 2048
          %222 = vsyncadd [#allocation3], %s221
          %s223 = sshll.u32 [#allocation2], 4
          %s224 = int_to_ptr.vmem [resolvable:$true] %s223
          %229 = dma.hbm_to_vmem [thread:$0]  %s3, 2048, %s224, [#allocation3], 128, 128, 8
        $region24: #{tpu_custom_call.1} parent=11 // pred_fallthru
          _
        // Predicated region
        $region25: #{tpu_custom_call.1} parent=11 // pred_check
          %p230 = pneg %p128
        $region26: #{tpu_custom_call.1} parent=11 // pred_check_branch
          %232 = sbr.rel (%p230) target = $region28
        $region27: #{tpu_custom_call.1} parent=11 // pred_region
          _
        $region28: #{tpu_custom_call.1} parent=11 // pred_fallthru
          _
        // Predicated region
        $region29: #{tpu_custom_call.1} parent=11 // pred_check
          %p233 = pneg %p149
        $region30: #{tpu_custom_call.1} parent=11 // pred_check_branch
          %235 = sbr.rel (%p233) target = $region32
        $region31: #{tpu_custom_call.1} parent=11 // pred_region
          %s237 = ssub.s32 2048, 2048
          %238 = vsyncadd [#allocation6], %s237
          %s239 = sshll.u32 [#allocation5], 4
          %s240 = int_to_ptr.vmem [resolvable:$true] %s239
          %245 = dma.hbm_to_vmem [thread:$0]  %s5, 2048, %s240, [#allocation6], 128, 128, 8
        $region32: #{tpu_custom_call.1} parent=11 // pred_fallthru
          _
        // Predicated region
        $region33: #{tpu_custom_call.1} parent=11 // pred_check
          %p246 = pneg %p170
        $region34: #{tpu_custom_call.1} parent=11 // pred_check_branch
          %248 = sbr.rel (%p246) target = $region36
        $region35: #{tpu_custom_call.1} parent=11 // pred_region
          _
        $region36: #{tpu_custom_call.1} parent=11 // pred_fallthru
          _
      $region12: #{tpu_custom_call.1} parent=5 // pred_fallthru
        _
      %p249 = scmp.lt.s32.totalorder %s18, 2
      // Predicated region
      $region37: #{tpu_custom_call.1} parent=5 // pred_check
        %p250 = pneg %p249
      $region38: #{tpu_custom_call.1} parent=5 // pred_check_branch
        %252 = sbr.rel (%p250) target = $region40
      $region39: #{tpu_custom_call.1} parent=5 // pred_region
        // Predicated region
        $region41: #{tpu_custom_call.1} parent=39 // pred_check
          %p253 = pneg %p38
        $region42: #{tpu_custom_call.1} parent=39 // pred_check_branch
          %255 = sbr.rel (%p253) target = $region44
        $region43: #{tpu_custom_call.1} parent=39 // pred_region
          %s256 = smul.u32 2, %s18
          %s257 = ssub.s32 3, %s256
          %p258 = scmp.lt.s32.totalorder %s257, 2
          %s259 = scalar_select %p258, %s257, 2
          %s260 = smul.u32 128, %s259
          %p261 = scmp.lt.s32.totalorder %s256, 2
          %s262 = scalar_select %p261, %s256, 2
          %s263 = smul.addr %s262, 8
          %s264 = scalar_lea.vmem %s0, %s263
          %s265 = smul.u32 2, %s18
          %s266 = ssub.s32 3, %s265
          %p267 = scmp.lt.s32.totalorder %s266, 2
          %s268 = scalar_select %p267, %s266, 2
          %s269 = smul.u32 128, %s268
        $region44: #{tpu_custom_call.1} parent=39 // pred_fallthru
          _
      $region40: #{tpu_custom_call.1} parent=5 // pred_fallthru
        _
      %p270 = scmp.le.s32.totalorder 1, %s18
      %p271 = scmp.lt.s32.totalorder %s18, 3
      %p272 = pnand %p270, %p271
      %p273 = pneg %p272
      // Predicated region
      $region45: #{tpu_custom_call.1} parent=5 // pred_check
        _
      $region46: #{tpu_custom_call.1} parent=5 // pred_check_branch
        %275 = sbr.rel (%p272) target = $region48
      $region47: #{tpu_custom_call.1} parent=5 // pred_region
        %s276 = ssub.s32 %s18, 1
        // Predicated region
        $region49: #{tpu_custom_call.1} parent=47 // pred_check
          %p277 = pneg %p107
        $region50: #{tpu_custom_call.1} parent=47 // pred_check_branch
          %279 = sbr.rel (%p277) target = $region52
        $region51: #{tpu_custom_call.1} parent=47 // pred_region
          %280 = dma.done [#allocation3], 2048
        $region52: #{tpu_custom_call.1} parent=47 // pred_fallthru
          _
        // Predicated region
        $region53: #{tpu_custom_call.1} parent=47 // pred_check
          %p281 = pneg %p149
        $region54: #{tpu_custom_call.1} parent=47 // pred_check_branch
          %283 = sbr.rel (%p281) target = $region56
        $region55: #{tpu_custom_call.1} parent=47 // pred_region
          %284 = dma.done [#allocation6], 2048
        $region56: #{tpu_custom_call.1} parent=47 // pred_fallthru
          _
        %s285 = smul.u32 2, %s23
        %s286 = ssub.s32 3, %s285
        %p287 = scmp.lt.s32.totalorder %s286, 2
        %s288 = scalar_select %p287, %s286, 2
        %s289 = smul.u32 128, %s288
        %p290 = scmp.lt.s32.totalorder %s285, 2
        %s291 = scalar_select %p290, %s285, 2
        %s292 = smul.addr %s291, 8
        %s293 = scalar_lea.vmem %s0, %s292
        %p294 = pneg %p44
        %p295 = pneg %p41
        %p296 = pneg %p65
        %p297 = pneg %p62
        %p298 = pneg %p86
        %p299 = pneg %p83
        %p300 = pneg %p107
        %p301 = pneg %p104
        %p302 = pneg %p128
        %p303 = pneg %p125
        %p304 = pneg %p149
        %p305 = pneg %p146
        %p306 = pneg %p170
        %p307 = pneg %p167
        %p308 = pneg %p196
        %p309 = pneg %p193
        %s310 = sand.u32 %s183, 1
        %s311 = scalar_lea.sflag [#allocation4], %s310
        %s312 = sand.u32 %s183, 1
        %s313 = smul.addr %s312, 16
        %s314 = scalar_lea.vmem [#allocation7], %s313
        %s315 = smul.u32 2, %s23
        %s316 = ssub.s32 3, %s315
        %p317 = scmp.lt.s32.totalorder %s316, 2
        %s318 = scalar_select %p317, %s316, 2
        %s319 = smul.u32 128, %s318
        %p320 = scmp.lt.s32.totalorder %s315, 2
        %s321 = scalar_select %p320, %s315, 2
        %s322 = smul.addr %s321, 8
        %s323 = scalar_lea.vmem %s0, %s322
        %s324 = smul.u32 2, %s23
        %s325 = ssub.s32 3, %s324
        %p326 = scmp.lt.s32.totalorder %s325, 2
        %s327 = scalar_select %p326, %s325, 2
        %s328 = smul.u32 128, %s327
        %s329 = smul.u32 2, %s23
        %s330 = ssub.s32 3, %s329
        %p331 = scmp.lt.s32.totalorder %s330, 2
        %s332 = scalar_select %p331, %s330, 2
        %s333 = smul.u32 128, %s332
        %v334 = vld [vmem:[%s323] sm:$0xff]
        %v335 = vld [vmem:[%s323 + $0x8] sm:$0xff]
        %v336 = vld [vmem:[%s1] sm:$0xff]
        %v337 = vld [vmem:[%s1 + $0x8] sm:$0x7]
        %v338 = vld [vmem:[%s2] sm:$0x1]
        %v340 = vlaneseq
        %v341 = vshrl.u32 %v340, 7
        %v342 = vsub.s32 0, %v341
        %v343 = vrot.slane %v338, %v342
        %vm345 = vcmask 89088
        %v347 = vsel %vm345, %v334, 0
        %v350 = vsel %vm345, %v335, 0
        %vm352 = vcmask 1042432
        %v354 = vsel %vm352, %v337, 0
        %356 = vmatprep.subr.mxu0 0.0
        %357 = vmatpush1.msra.mxu0 0.0
        %358 = vmatprep.subr.mxu0 0.0
        %359 = vmatpush1.msra.mxu0 0.0
        %360 = vmatprep.subr.mxu0 0.0
        %361 = vmatpush1.msra.mxu0 0.0
        %362 = vmatprep.subr.mxu0 0.0
        %363 = vmatpush1.msra.mxu0 0.0
        %364 = vmatprep.subr.mxu0 0.0
        %365 = vmatpush1.msra.mxu0 0.0
        %366 = vmatprep.subr.mxu0 0.0
        %367 = vmatpush1.msra.mxu0 0.0
        %368 = vmatprep.subr.mxu0 0.0
        %369 = vmatpush1.msra.mxu0 0.0
        %370 = vmatprep.subr.mxu0 0.0
        %371 = vmatpush1.msra.mxu0 0.0
        %372 = vmatprep.subr.mxu0 0.0
        %373 = vmatpush1.msra.mxu0 0.0
        %374 = vmatprep.subr.mxu0 0.0
        %375 = vmatpush1.msra.mxu0 0.0
        %376 = vmatprep.subr.mxu0 0.0
        %377 = vmatpush1.msra.mxu0 0.0
        %378 = vmatprep.subr.mxu0 0.0
        %379 = vmatpush1.msra.mxu0 0.0
        %380 = vmatprep.subr.mxu0 0.0
        %381 = vmatpush1.msra.mxu0 0.0
        %382 = vmatprep.subr.mxu0 0.0
        %383 = vmatpush1.msra.mxu0 0.0
        %384 = vmatprep.subr.mxu0 0.0
        %385 = vmatpush1.msra.mxu0 %v354
        %386 = vmatprep.subr.mxu0 0.0
        %387 = vmatpush1.msra.mxu0 %v336
        %388 = vmatprep.subr.mxu0 0.0
        %389 = vmatpush2.msra.mxu0 0.0
        %390 = vmatprep.subr.mxu0 0.0
        %391 = vmatpush2.msra.mxu0 0.0
        %392 = vmatprep.subr.mxu0 0.0
        %393 = vmatpush2.msra.mxu0 0.0
        %394 = vmatprep.subr.mxu0 0.0
        %395 = vmatpush2.msra.mxu0 0.0
        %396 = vmatprep.subr.mxu0 0.0
        %397 = vmatpush2.msra.mxu0 0.0
        %398 = vmatprep.subr.mxu0 0.0
        %399 = vmatpush2.msra.mxu0 0.0
        %400 = vmatprep.subr.mxu0 0.0
        %401 = vmatpush2.msra.mxu0 0.0
        %402 = vmatprep.subr.mxu0 0.0
        %403 = vmatpush2.msra.mxu0 0.0
        %404 = vmatprep.subr.mxu0 0.0
        %405 = vmatpush2.msra.mxu0 0.0
        %406 = vmatprep.subr.mxu0 0.0
        %407 = vmatpush2.msra.mxu0 0.0
        %408 = vmatprep.subr.mxu0 0.0
        %409 = vmatpush2.msra.mxu0 0.0
        %410 = vmatprep.subr.mxu0 0.0
        %411 = vmatpush2.msra.mxu0 0.0
        %412 = vmatprep.subr.mxu0 0.0
        %413 = vmatpush2.msra.mxu0 0.0
        %414 = vmatprep.subr.mxu0 0.0
        %415 = vmatpush2.msra.mxu0 0.0
        %416 = vmatprep.subr.mxu0 0.0
        %417 = vmatpush2.msra.mxu0 0.0
        %418 = vmatprep.subr.mxu0 0.0
        %419 = vmatpush2.msra.mxu0 0.0
        %420 = vmatprep.mubr.f32.mxu0 0.0
        %421 = vmatmul.mubr.f32.gmra.mxu0 %v347
        %v422 = vpop.f32.mrf.mxu0
        %v423 = vadd.f32 %v343, %v422
        %v424 = vpop.f32.mrf.mxu0
        %425 = vmatprep.mubr.f32.mxu0 0.0
        %426 = vmatmul.mubr.f32.gmra.mxu0 %v350
        %v427 = vpop.f32.mrf.mxu0
        %v428 = vadd.f32 %v343, %v427
        %v429 = vpop.f32.mrf.mxu0
        %430 = vdwg.mxu0
        %v431 = vmax.f32 %v423, 0.0
        %v432 = vmax.f32 %v428, 0.0
        %v433 = vld [vmem:[#allocation2] sm:$0xff]
        %v434 = vld [vmem:[#allocation2 + $0x8] sm:$0xff]
        %v435 = vld [vmem:[#allocation2 + $0x10] sm:$0xff]
        %v436 = vld [vmem:[#allocation2 + $0x18] sm:$0xff]
        %v437 = vld [vmem:[#allocation2 + $0x20] sm:$0xff]
        %v438 = vld [vmem:[#allocation2 + $0x28] sm:$0xff]
        %v439 = vld [vmem:[#allocation2 + $0x30] sm:$0xff]
        %v440 = vld [vmem:[#allocation2 + $0x38] sm:$0xff]
        %v441 = vld [vmem:[#allocation2 + $0x40] sm:$0xff]
        %v442 = vld [vmem:[#allocation2 + $0x48] sm:$0xff]
        %v443 = vld [vmem:[#allocation2 + $0x50] sm:$0xff]
        %v444 = vld [vmem:[#allocation2 + $0x58] sm:$0xff]
        %v445 = vld [vmem:[#allocation2 + $0x60] sm:$0xff]
        %v446 = vld [vmem:[#allocation2 + $0x68] sm:$0xff]
        %v447 = vld [vmem:[#allocation2 + $0x70] sm:$0xff]
        %v448 = vld [vmem:[#allocation2 + $0x78] sm:$0xff]
        %v449 = vld [vmem:[%s4] sm:$0x1]
        %v451 = vlaneseq
        %v452 = vshrl.u32 %v451, 7
        %v453 = vsub.s32 0, %v452
        %v454 = vrot.slane %v449, %v453
        %456 = vmatprep.subr.mxu0 0.0
        %457 = vmatpush1.msra.mxu0 %v448
        %458 = vmatprep.subr.mxu0 0.0
        %459 = vmatpush1.msra.mxu0 %v447
        %460 = vmatprep.subr.mxu0 0.0
        %461 = vmatpush1.msra.mxu0 %v446
        %462 = vmatprep.subr.mxu0 0.0
        %463 = vmatpush1.msra.mxu0 %v445
        %464 = vmatprep.subr.mxu0 0.0
        %465 = vmatpush1.msra.mxu0 %v444
        %466 = vmatprep.subr.mxu0 0.0
        %467 = vmatpush1.msra.mxu0 %v443
        %468 = vmatprep.subr.mxu0 0.0
        %469 = vmatpush1.msra.mxu0 %v442
        %470 = vmatprep.subr.mxu0 0.0
        %471 = vmatpush1.msra.mxu0 %v441
        %472 = vmatprep.subr.mxu0 0.0
        %473 = vmatpush1.msra.mxu0 %v440
        %474 = vmatprep.subr.mxu0 0.0
        %475 = vmatpush1.msra.mxu0 %v439
        %476 = vmatprep.subr.mxu0 0.0
        %477 = vmatpush1.msra.mxu0 %v438
        %478 = vmatprep.subr.mxu0 0.0
        %479 = vmatpush1.msra.mxu0 %v437
        %480 = vmatprep.subr.mxu0 0.0
        %481 = vmatpush1.msra.mxu0 %v436
        %482 = vmatprep.subr.mxu0 0.0
        %483 = vmatpush1.msra.mxu0 %v435
        %484 = vmatprep.subr.mxu0 0.0
        %485 = vmatpush1.msra.mxu0 %v434
        %486 = vmatprep.subr.mxu0 0.0
        %487 = vmatpush1.msra.mxu0 %v433
        %488 = vmatprep.subr.mxu0 0.0
        %489 = vmatpush2.msra.mxu0 0.0
        %490 = vmatprep.subr.mxu0 0.0
        %491 = vmatpush2.msra.mxu0 0.0
        %492 = vmatprep.subr.mxu0 0.0
        %493 = vmatpush2.msra.mxu0 0.0
        %494 = vmatprep.subr.mxu0 0.0
        %495 = vmatpush2.msra.mxu0 0.0
        %496 = vmatprep.subr.mxu0 0.0
        %497 = vmatpush2.msra.mxu0 0.0
        %498 = vmatprep.subr.mxu0 0.0
        %499 = vmatpush2.msra.mxu0 0.0
        %500 = vmatprep.subr.mxu0 0.0
        %501 = vmatpush2.msra.mxu0 0.0
        %502 = vmatprep.subr.mxu0 0.0
        %503 = vmatpush2.msra.mxu0 0.0
        %504 = vmatprep.subr.mxu0 0.0
        %505 = vmatpush2.msra.mxu0 0.0
        %506 = vmatprep.subr.mxu0 0.0
        %507 = vmatpush2.msra.mxu0 0.0
        %508 = vmatprep.subr.mxu0 0.0
        %509 = vmatpush2.msra.mxu0 0.0
        %510 = vmatprep.subr.mxu0 0.0
        %511 = vmatpush2.msra.mxu0 0.0
        %512 = vmatprep.subr.mxu0 0.0
        %513 = vmatpush2.msra.mxu0 0.0
        %514 = vmatprep.subr.mxu0 0.0
        %515 = vmatpush2.msra.mxu0 0.0
        %516 = vmatprep.subr.mxu0 0.0
        %517 = vmatpush2.msra.mxu0 0.0
        %518 = vmatprep.subr.mxu0 0.0
        %519 = vmatpush2.msra.mxu0 0.0
        %520 = vmatprep.mubr.f32.mxu0 0.0
        %521 = vmatmul.mubr.f32.gmra.mxu0 %v431
        %v522 = vpop.f32.mrf.mxu0
        %v523 = vadd.f32 %v454, %v522
        %v524 = vpop.f32.mrf.mxu0
        %525 = vmatprep.mubr.f32.mxu0 0.0
        %526 = vmatmul.mubr.f32.gmra.mxu0 %v432
        %v527 = vpop.f32.mrf.mxu0
        %v528 = vadd.f32 %v454, %v527
        %v529 = vpop.f32.mrf.mxu0
        %530 = vdwg.mxu0
        %v531 = vmax.f32 %v523, 0.0
        %v532 = vmax.f32 %v528, 0.0
        %v533 = vld [vmem:[#allocation5] sm:$0xff]
        %v534 = vld [vmem:[#allocation5 + $0x8] sm:$0xff]
        %v535 = vld [vmem:[#allocation5 + $0x10] sm:$0xff]
        %v536 = vld [vmem:[#allocation5 + $0x18] sm:$0xff]
        %v537 = vld [vmem:[#allocation5 + $0x20] sm:$0xff]
        %v538 = vld [vmem:[#allocation5 + $0x28] sm:$0xff]
        %v539 = vld [vmem:[#allocation5 + $0x30] sm:$0xff]
        %v540 = vld [vmem:[#allocation5 + $0x38] sm:$0xff]
        %v541 = vld [vmem:[#allocation5 + $0x40] sm:$0xff]
        %v542 = vld [vmem:[#allocation5 + $0x48] sm:$0xff]
        %v543 = vld [vmem:[#allocation5 + $0x50] sm:$0xff]
        %v544 = vld [vmem:[#allocation5 + $0x58] sm:$0xff]
        %v545 = vld [vmem:[#allocation5 + $0x60] sm:$0xff]
        %v546 = vld [vmem:[#allocation5 + $0x68] sm:$0xff]
        %v547 = vld [vmem:[#allocation5 + $0x70] sm:$0xff]
        %v548 = vld [vmem:[#allocation5 + $0x78] sm:$0xff]
        %v549 = vld [vmem:[%s6] sm:$0x1]
        %v551 = vlaneseq
        %v552 = vshrl.u32 %v551, 7
        %v553 = vsub.s32 0, %v552
        %v554 = vrot.slane %v549, %v553
        %556 = vmatprep.subr.mxu0 0.0
        %557 = vmatpush1.msra.mxu0 %v548
        %558 = vmatprep.subr.mxu0 0.0
        %559 = vmatpush1.msra.mxu0 %v547
        %560 = vmatprep.subr.mxu0 0.0
        %561 = vmatpush1.msra.mxu0 %v546
        %562 = vmatprep.subr.mxu0 0.0
        %563 = vmatpush1.msra.mxu0 %v545
        %564 = vmatprep.subr.mxu0 0.0
        %565 = vmatpush1.msra.mxu0 %v544
        %566 = vmatprep.subr.mxu0 0.0
        %567 = vmatpush1.msra.mxu0 %v543
        %568 = vmatprep.subr.mxu0 0.0
        %569 = vmatpush1.msra.mxu0 %v542
        %570 = vmatprep.subr.mxu0 0.0
        %571 = vmatpush1.msra.mxu0 %v541
        %572 = vmatprep.subr.mxu0 0.0
        %573 = vmatpush1.msra.mxu0 %v540
        %574 = vmatprep.subr.mxu0 0.0
        %575 = vmatpush1.msra.mxu0 %v539
        %576 = vmatprep.subr.mxu0 0.0
        %577 = vmatpush1.msra.mxu0 %v538
        %578 = vmatprep.subr.mxu0 0.0
        %579 = vmatpush1.msra.mxu0 %v537
        %580 = vmatprep.subr.mxu0 0.0
        %581 = vmatpush1.msra.mxu0 %v536
        %582 = vmatprep.subr.mxu0 0.0
        %583 = vmatpush1.msra.mxu0 %v535
        %584 = vmatprep.subr.mxu0 0.0
        %585 = vmatpush1.msra.mxu0 %v534
        %586 = vmatprep.subr.mxu0 0.0
        %587 = vmatpush1.msra.mxu0 %v533
        %588 = vmatprep.subr.mxu0 0.0
        %589 = vmatpush2.msra.mxu0 0.0
        %590 = vmatprep.subr.mxu0 0.0
        %591 = vmatpush2.msra.mxu0 0.0
        %592 = vmatprep.subr.mxu0 0.0
        %593 = vmatpush2.msra.mxu0 0.0
        %594 = vmatprep.subr.mxu0 0.0
        %595 = vmatpush2.msra.mxu0 0.0
        %596 = vmatprep.subr.mxu0 0.0
        %597 = vmatpush2.msra.mxu0 0.0
        %598 = vmatprep.subr.mxu0 0.0
        %599 = vmatpush2.msra.mxu0 0.0
        %600 = vmatprep.subr.mxu0 0.0
        %601 = vmatpush2.msra.mxu0 0.0
        %602 = vmatprep.subr.mxu0 0.0
        %603 = vmatpush2.msra.mxu0 0.0
        %604 = vmatprep.subr.mxu0 0.0
        %605 = vmatpush2.msra.mxu0 0.0
        %606 = vmatprep.subr.mxu0 0.0
        %607 = vmatpush2.msra.mxu0 0.0
        %608 = vmatprep.subr.mxu0 0.0
        %609 = vmatpush2.msra.mxu0 0.0
        %610 = vmatprep.subr.mxu0 0.0
        %611 = vmatpush2.msra.mxu0 0.0
        %612 = vmatprep.subr.mxu0 0.0
        %613 = vmatpush2.msra.mxu0 0.0
        %614 = vmatprep.subr.mxu0 0.0
        %615 = vmatpush2.msra.mxu0 0.0
        %616 = vmatprep.subr.mxu0 0.0
        %617 = vmatpush2.msra.mxu0 0.0
        %618 = vmatprep.subr.mxu0 0.0
        %619 = vmatpush2.msra.mxu0 0.0
        %620 = vmatprep.mubr.f32.mxu0 0.0
        %621 = vmatmul.mubr.f32.gmra.mxu0 %v531
        %v622 = vpop.f32.mrf.mxu0
        %v623 = vadd.f32 %v554, %v622
        %v624 = vpop.f32.mrf.mxu0
        %625 = vmatprep.mubr.f32.mxu0 0.0
        %626 = vmatmul.mubr.f32.gmra.mxu0 %v532
        %v627 = vpop.f32.mrf.mxu0
        %v628 = vadd.f32 %v554, %v627
        %v629 = vpop.f32.mrf.mxu0
        %630 = vdwg.mxu0
        %v631 = vmax.f32 %v623, 0.0
        %v632 = vmax.f32 %v628, 0.0
        %633 = vst [vmem:[%s314] sm:$0xff] %v631
        %634 = vst [vmem:[%s314 + $0x8] sm:$0xff] %v632
        %s635 = sand.u32 %s183, 1
        %s636 = scalar_lea.sflag [#allocation4], %s635
        %s637 = sand.u32 %s183, 1
        %s638 = smul.addr %s637, 16
        %s639 = scalar_lea.vmem [#allocation7], %s638
        // Predicated region
        $region57: #{tpu_custom_call.1} parent=47 // pred_check
          %p640 = pneg %p193
        $region58: #{tpu_custom_call.1} parent=47 // pred_check_branch
          %642 = sbr.rel (%p640) target = $region60
        $region59: #{tpu_custom_call.1} parent=47 // pred_region
          %s643 = smul.u32 2, %s23
          %s644 = ssub.s32 3, %s643
          %p645 = scmp.lt.s32.totalorder %s644, 2
          %s646 = scalar_select %p645, %s644, 2
          %s647 = smul.u32 128, %s646
          %s649 = ssub.s32 256, %s647
          %650 = vsyncadd %s636, %s649
          %p651 = scmp.ne.s32.totalorder 0, %s647
          %s652 = smul.addr %s643, 128
          %s653 = scalar_lea.hbm %s7, %s652
          %s654 = smul.u32 8, %s646
          %s655 = sshll.u32 %s639, 4
          %s656 = int_to_ptr.vmem [resolvable:$true] %s655
          %s657 = sshll.u32 %s654, 4
          %661 = dma.vmem_to_hbm [thread:$0]  (%p651), %s656, %s657, %s653, %s636, 128, 128, 8
        $region60: #{tpu_custom_call.1} parent=47 // pred_fallthru
          _
      $region48: #{tpu_custom_call.1} parent=5 // pred_fallthru
        _
      %p662 = scmp.le.s32.totalorder 2, %s18
      // Predicated region
      $region61: #{tpu_custom_call.1} parent=5 // pred_check
        %p663 = pneg %p662
      $region62: #{tpu_custom_call.1} parent=5 // pred_check_branch
        %665 = sbr.rel (%p663) target = $region64
      $region63: #{tpu_custom_call.1} parent=5 // pred_region
        %s666 = ssub.s32 %s18, 2
        // Predicated region
        $region65: #{tpu_custom_call.1} parent=63 // pred_check
          %p667 = pneg %p199
        $region66: #{tpu_custom_call.1} parent=63 // pred_check_branch
          %669 = sbr.rel (%p667) target = $region68
        $region67: #{tpu_custom_call.1} parent=63 // pred_region
          %s670 = sand.u32 %s184, 1
          %s671 = scalar_lea.sflag [#allocation4], %s670
          %s672 = sand.u32 %s184, 1
          %s673 = smul.addr %s672, 16
          %s674 = scalar_lea.vmem [#allocation7], %s673
          %675 = dma.done %s671, 256
        $region68: #{tpu_custom_call.1} parent=63 // pred_fallthru
          _
      $region64: #{tpu_custom_call.1} parent=5 // pred_fallthru
        _
    $region6: #{tpu_custom_call.1} parent=1 // loop_footer
      %s22 = sadd.s32 1, %s18
    $region7: #{tpu_custom_call.1} parent=1 // loop_footer_branch
      %17 = sbr.rel target = $region3
    $region8: #{tpu_custom_call.1} parent=1 // loop_exit
      _
    %676 = vsyncpa [#allocation3], 1
    %s677 = scalar_lea.sflag [#allocation3], 1
    %678 = vsyncpa %s677, 1
    %679 = vsyncpa [#allocation6], 1
    %680 = vsyncpa [#allocation4], 1
    %s681 = scalar_lea.sflag [#allocation4], 1
    %682 = vsyncpa %s681, 1

</llo_original>
